<compile_context>
chip_gen: v6e
topology: v6e:2x2x1
jax: 0.10.0
libtpu: 0.0.40
codegen_flags: <defaults>
</compile_context>

<pallas_src>
import jax
import jax.numpy as jnp
import numpy as np
from jax.experimental import pallas as pl
from jax.experimental.pallas import tpu as pltpu

B, H, HH, L, T = 8, 128, 128, 8, 8   # batch, hidden, hidden_hidden, logsig dim, #intervals


def _nrde_fused_kernel(h0_ref, ls_ref, w1_ref, b1_ref, w2_ref, b2_ref,
                       out_ref, h_scr):
    """One grid step == one logsignature interval t.

    h0_ref : (B, H)       initial hidden state (only read at t == 0)
    ls_ref : (1, B, L)    logsignature of interval t
    w1_ref : (H, HH),   b1_ref : (1, HH)
    w2_ref : (HH, L*H), b2_ref : (1, L*H)   -- columns permuted to l-major
    out_ref: (1, B, H)    this step's cell output
    h_scr  : (B, H)       VMEM-carried hidden state
    """
    t = pl.program_id(0)

    @pl.when(t == 0)
    def _():
        h_scr[...] = h0_ref[...]

    h = h_scr[...]
    # func(h): Linear -> tanh -> Linear -> tanh, A kept flat (l-major columns).
    z = jnp.tanh(jnp.dot(h, w1_ref[...], preferred_element_type=jnp.float32)
                 + b1_ref[...])
    a = jnp.tanh(jnp.dot(z, w2_ref[...], preferred_element_type=jnp.float32)
                 + b2_ref[...])                         # (B, L*H)

    # bmm(A, logsig[t].unsqueeze(2)).squeeze(2):
    #   out[b, h] = sum_l A[b, h, l] * ls[b, l]
    # With l-major columns this is L aligned 128-lane slices, each scaled by a
    # lane-broadcast scalar per (b, l) and accumulated -- pure VPU work.
    ls = ls_ref[0]                                      # (B, L)
    out = a[:, 0:H] * ls[:, 0:1]
    for l in range(1, L):
        out = out + a[:, l * H:(l + 1) * H] * ls[:, l:l + 1]

    out_ref[0] = out
    # Explicit-Euler / log-ODE carry to the next interval.
    h_scr[...] = h + out


def nrde_cell_fused(h0, logsig_table, w1, b1, w2, b2):
    """Runs the _NRDECell forward for all T intervals in ONE pallas_call."""
    # One-time column permutation: perm[l*H + h] = h*L + l  (h-major -> l-major),
    # so A_perm[b, l*H + h] == func(h).reshape(B, H, L)[b, h, l].
    c = jnp.arange(L * H)
    perm = (c % H) * L + (c // H)
    w2p = w2[:, perm]
    b2p = b2[:, perm]

    grid_spec = pltpu.PrefetchScalarGridSpec(
        num_scalar_prefetch=0,
        grid=(T,),
        in_specs=[
            pl.BlockSpec((B, H), lambda t: (0, 0)),          # h0     (resident)
            pl.BlockSpec((1, B, L), lambda t: (t, 0, 0)),    # logsig[t]
            pl.BlockSpec((H, HH), lambda t: (0, 0)),         # w1     (resident)
            pl.BlockSpec((1, HH), lambda t: (0, 0)),         # b1     (resident)
            pl.BlockSpec((HH, L * H), lambda t: (0, 0)),     # w2 l-major (resident)
            pl.BlockSpec((1, L * H), lambda t: (0, 0)),      # b2 l-major (resident)
        ],
        out_specs=pl.BlockSpec((1, B, H), lambda t: (t, 0, 0)),
        scratch_shapes=[pltpu.VMEM((B, H), jnp.float32)],    # carried hidden state
    )
    return pl.pallas_call(
        _nrde_fused_kernel,
        out_shape=jax.ShapeDtypeStruct((T, B, H), jnp.float32),
        grid_spec=grid_spec,
        compiler_params=pltpu.CompilerParams(
            dimension_semantics=("arbitrary",)),   # sequential carry over t
    )(h0, logsig_table, w1, b1, w2p, b2p)


def nrde_cell_ref_step(t, h, logsig_table, w1, b1, w2, b2):
    """Pure-JAX mirror of the PyTorch _NRDECell.forward for a single (t, h)."""
    hp = jax.lax.Precision.HIGHEST
    z = jnp.tanh(jnp.dot(h, w1, precision=hp) + b1)
    a = jnp.tanh(jnp.dot(z, w2, precision=hp) + b2).reshape(B, H, L)   # A = func(h)
    return jnp.einsum("bhl,bl->bh", a, logsig_table[t], precision=hp)  # bmm(...).squeeze(2)


def nrde_fused_ref(h0, logsig_table, w1, b1, w2, b2):
    h = h0
    outs = []
    for t in range(T):
        o = nrde_cell_ref_step(t, h, logsig_table, w1, b1, w2, b2)
        outs.append(o)
        h = h + o            # same Euler carry as the kernel
    return jnp.stack(outs, axis=0)


if __name__ == "__main__":
    key = jax.random.PRNGKey(0)
    k1, k2, k3, k4, k5, k6 = jax.random.split(key, 6)

    h0 = jax.random.normal(k1, (B, H), dtype=jnp.float32)
    logsig_table = jax.random.normal(k2, (T, B, L), dtype=jnp.float32) * 0.1

    # Deterministic synthetic parameters for func (original h-major layout).
    w1 = jax.random.normal(k3, (H, HH), dtype=jnp.float32) / jnp.sqrt(float(H))
    b1 = jax.random.normal(k4, (1, HH), dtype=jnp.float32) * 0.1
    w2 = jax.random.normal(k5, (HH, H * L), dtype=jnp.float32) / jnp.sqrt(float(HH))
    b2 = jax.random.normal(k6, (1, H * L), dtype=jnp.float32) * 0.1

    out = jax.block_until_ready(nrde_cell_fused(h0, logsig_table, w1, b1, w2, b2))
    ref = nrde_fused_ref(h0, logsig_table, w1, b1, w2, b2)

    assert out.shape == (T, B, H), out.shape
    err = np.max(np.abs(np.asarray(out) - np.asarray(ref)))
    assert np.allclose(np.asarray(out), np.asarray(ref), atol=1e-4, rtol=1e-4), err
    print("KERNEL_OK")
</pallas_src>

<mosaic_0001>
module attributes {stable_mosaic.version = 11 : i64} {
  func.func @_nrde_fused_kernel(%arg0: i32, %arg1: memref<8x128xf32, #tpu.memory_space<vmem>>, %arg2: memref<1x8x8xf32, #tpu.memory_space<vmem>>, %arg3: memref<128x128xf32, #tpu.memory_space<vmem>>, %arg4: memref<1x128xf32, #tpu.memory_space<vmem>>, %arg5: memref<128x1024xf32, #tpu.memory_space<vmem>>, %arg6: memref<1x1024xf32, #tpu.memory_space<vmem>>, %arg7: memref<1x8x128xf32, #tpu.memory_space<vmem>>, %arg8: memref<8x128xf32, #tpu.memory_space<vmem>>) attributes {dimension_semantics = [#tpu.dimension_semantics<arbitrary>], iteration_bounds = array<i64: 8>, scalar_prefetch = 0 : i64, scratch_operands = 1 : i64, tpu.core_type = #tpu.core_type<tc>, window_params = [{pipeline_mode = #tpu.pipeline_mode<synchronous>, transform_indices = @transform_0, window_bounds = array<i64: 8, 128>}, {transform_indices = @transform_1, window_bounds = array<i64: 1, 8, 8>}, {pipeline_mode = #tpu.pipeline_mode<synchronous>, transform_indices = @transform_2, window_bounds = array<i64: 128, 128>}, {pipeline_mode = #tpu.pipeline_mode<synchronous>, transform_indices = @transform_3, window_bounds = array<i64: 1, 128>}, {pipeline_mode = #tpu.pipeline_mode<synchronous>, transform_indices = @transform_4, window_bounds = array<i64: 128, 1024>}, {pipeline_mode = #tpu.pipeline_mode<synchronous>, transform_indices = @transform_5, window_bounds = array<i64: 1, 1024>}, {transform_indices = @transform_6, window_bounds = array<i64: 1, 8, 128>}]} {
    %c0_i32 = arith.constant 0 : i32
    %0 = arith.cmpi eq, %arg0, %c0_i32 : i32
    %1 = arith.extui %0 : i1 to i32
    %c0_i32_0 = arith.constant 0 : i32
    %2 = arith.cmpi ne, %1, %c0_i32_0 : i32
    scf.if %2 {
      %c0_19 = arith.constant 0 : index
      %c0_20 = arith.constant 0 : index
      %62 = vector.load %arg1[%c0_19, %c0_20] : memref<8x128xf32, #tpu.memory_space<vmem>>, vector<8x128xf32>
      %c0_21 = arith.constant 0 : index
      %c0_22 = arith.constant 0 : index
      %63 = vector.load %arg8[%c0_21, %c0_22] : memref<8x128xf32, #tpu.memory_space<vmem>>, vector<8x128xf32>
      tpu.vector_store %arg8[%c0_21, %c0_22], %62 {strides = array<i32>} : memref<8x128xf32, #tpu.memory_space<vmem>>, vector<8x128xf32>,
    } else {
    }
    %c0 = arith.constant 0 : index
    %c0_1 = arith.constant 0 : index
    %3 = vector.load %arg8[%c0, %c0_1] : memref<8x128xf32, #tpu.memory_space<vmem>>, vector<8x128xf32>
    %c0_2 = arith.constant 0 : index
    %c0_3 = arith.constant 0 : index
    %4 = vector.load %arg3[%c0_2, %c0_3] : memref<128x128xf32, #tpu.memory_space<vmem>>, vector<128x128xf32>
    %cst = arith.constant dense<0.000000e+00> : vector<8x128xf32>
    %5 = tpu.matmul %3, %4, %cst {dimension_numbers = #tpu.dot_dimension_numbers<[1], [0], [0], [1], [0, 0, 1, 1], [], []>} : vector<8x128xf32>, vector<128x128xf32>, vector<8x128xf32> -> vector<8x128xf32>
    %c0_4 = arith.constant 0 : index
    %c0_5 = arith.constant 0 : index
    %6 = vector.load %arg4[%c0_4, %c0_5] : memref<1x128xf32, #tpu.memory_space<vmem>>, vector<1x128xf32>
    %7 = vector.broadcast %6 : vector<1x128xf32> to vector<8x128xf32>
    %8 = arith.addf %5, %7 : vector<8x128xf32>
    %9 = math.tanh %8 : vector<8x128xf32>
    %c0_6 = arith.constant 0 : index
    %c0_7 = arith.constant 0 : index
    %10 = vector.load %arg5[%c0_6, %c0_7] : memref<128x1024xf32, #tpu.memory_space<vmem>>, vector<128x1024xf32>
    %cst_8 = arith.constant dense<0.000000e+00> : vector<8x1024xf32>
    %11 = tpu.matmul %9, %10, %cst_8 {dimension_numbers = #tpu.dot_dimension_numbers<[1], [0], [0], [1], [0, 0, 1, 1], [], []>} : vector<8x128xf32>, vector<128x1024xf32>, vector<8x1024xf32> -> vector<8x1024xf32>
    %c0_9 = arith.constant 0 : index
    %c0_10 = arith.constant 0 : index
    %12 = vector.load %arg6[%c0_9, %c0_10] : memref<1x1024xf32, #tpu.memory_space<vmem>>, vector<1x1024xf32>
    %13 = vector.broadcast %12 : vector<1x1024xf32> to vector<8x1024xf32>
    %14 = arith.addf %11, %13 : vector<8x1024xf32>
    %15 = math.tanh %14 : vector<8x1024xf32>
    %c0_11 = arith.constant 0 : index
    %c0_12 = arith.constant 0 : index
    %c0_13 = arith.constant 0 : index
    %16 = vector.load %arg2[%c0_11, %c0_12, %c0_13] : memref<1x8x8xf32, #tpu.memory_space<vmem>>, vector<1x8x8xf32>
    %17 = vector.shape_cast %16 : vector<1x8x8xf32> to vector<8x8xf32>
    %18 = vector.extract_strided_slice %15 {offsets = [0, 0], sizes = [8, 128], strides = [1, 1]} : vector<8x1024xf32> to vector<8x128xf32>
    %19 = vector.extract_strided_slice %17 {offsets = [0, 0], sizes = [8, 1], strides = [1, 1]} : vector<8x8xf32> to vector<8x1xf32>
    %20 = vector.broadcast %19 : vector<8x1xf32> to vector<8x128xf32>
    %21 = arith.mulf %18, %20 : vector<8x128xf32>
    %22 = vector.extract_strided_slice %15 {offsets = [0, 128], sizes = [8, 128], strides = [1, 1]} : vector<8x1024xf32> to vector<8x128xf32>
    %23 = vector.extract_strided_slice %17 {offsets = [0, 1], sizes = [8, 1], strides = [1, 1]} : vector<8x8xf32> to vector<8x1xf32>
    %24 = vector.broadcast %23 : vector<8x1xf32> to vector<8x128xf32>
    %25 = arith.mulf %22, %24 : vector<8x128xf32>
    %26 = arith.addf %21, %25 : vector<8x128xf32>
    %27 = vector.extract_strided_slice %15 {offsets = [0, 256], sizes = [8, 128], strides = [1, 1]} : vector<8x1024xf32> to vector<8x128xf32>
    %28 = vector.extract_strided_slice %17 {offsets = [0, 2], sizes = [8, 1], strides = [1, 1]} : vector<8x8xf32> to vector<8x1xf32>
    %29 = vector.broadcast %28 : vector<8x1xf32> to vector<8x128xf32>
    %30 = arith.mulf %27, %29 : vector<8x128xf32>
    %31 = arith.addf %26, %30 : vector<8x128xf32>
    %32 = vector.extract_strided_slice %15 {offsets = [0, 384], sizes = [8, 128], strides = [1, 1]} : vector<8x1024xf32> to vector<8x128xf32>
    %33 = vector.extract_strided_slice %17 {offsets = [0, 3], sizes = [8, 1], strides = [1, 1]} : vector<8x8xf32> to vector<8x1xf32>
    %34 = vector.broadcast %33 : vector<8x1xf32> to vector<8x128xf32>
    %35 = arith.mulf %32, %34 : vector<8x128xf32>
    %36 = arith.addf %31, %35 : vector<8x128xf32>
    %37 = vector.extract_strided_slice %15 {offsets = [0, 512], sizes = [8, 128], strides = [1, 1]} : vector<8x1024xf32> to vector<8x128xf32>
    %38 = vector.extract_strided_slice %17 {offsets = [0, 4], sizes = [8, 1], strides = [1, 1]} : vector<8x8xf32> to vector<8x1xf32>
    %39 = vector.broadcast %38 : vector<8x1xf32> to vector<8x128xf32>
    %40 = arith.mulf %37, %39 : vector<8x128xf32>
    %41 = arith.addf %36, %40 : vector<8x128xf32>
    %42 = vector.extract_strided_slice %15 {offsets = [0, 640], sizes = [8, 128], strides = [1, 1]} : vector<8x1024xf32> to vector<8x128xf32>
    %43 = vector.extract_strided_slice %17 {offsets = [0, 5], sizes = [8, 1], strides = [1, 1]} : vector<8x8xf32> to vector<8x1xf32>
    %44 = vector.broadcast %43 : vector<8x1xf32> to vector<8x128xf32>
    %45 = arith.mulf %42, %44 : vector<8x128xf32>
    %46 = arith.addf %41, %45 : vector<8x128xf32>
    %47 = vector.extract_strided_slice %15 {offsets = [0, 768], sizes = [8, 128], strides = [1, 1]} : vector<8x1024xf32> to vector<8x128xf32>
    %48 = vector.extract_strided_slice %17 {offsets = [0, 6], sizes = [8, 1], strides = [1, 1]} : vector<8x8xf32> to vector<8x1xf32>
    %49 = vector.broadcast %48 : vector<8x1xf32> to vector<8x128xf32>
    %50 = arith.mulf %47, %49 : vector<8x128xf32>
    %51 = arith.addf %46, %50 : vector<8x128xf32>
    %52 = vector.extract_strided_slice %15 {offsets = [0, 896], sizes = [8, 128], strides = [1, 1]} : vector<8x1024xf32> to vector<8x128xf32>
    %53 = vector.extract_strided_slice %17 {offsets = [0, 7], sizes = [8, 1], strides = [1, 1]} : vector<8x8xf32> to vector<8x1xf32>
    %54 = vector.broadcast %53 : vector<8x1xf32> to vector<8x128xf32>
    %55 = arith.mulf %52, %54 : vector<8x128xf32>
    %56 = arith.addf %51, %55 : vector<8x128xf32>
    %c0_14 = arith.constant 0 : index
    %c0_15 = arith.constant 0 : index
    %c0_16 = arith.constant 0 : index
    %57 = vector.load %arg7[%c0_14, %c0_15, %c0_16] : memref<1x8x128xf32, #tpu.memory_space<vmem>>, vector<1x8x128xf32>
    %58 = vector.shape_cast %57 : vector<1x8x128xf32> to vector<8x128xf32>
    %59 = vector.shape_cast %56 : vector<8x128xf32> to vector<1x8x128xf32>
    tpu.vector_store %arg7[%c0_14, %c0_15, %c0_16], %59 {strides = array<i32>} : memref<1x8x128xf32, #tpu.memory_space<vmem>>, vector<1x8x128xf32>,
    %60 = arith.addf %3, %56 : vector<8x128xf32>
    %c0_17 = arith.constant 0 : index
    %c0_18 = arith.constant 0 : index
    %61 = vector.load %arg8[%c0_17, %c0_18] : memref<8x128xf32, #tpu.memory_space<vmem>>, vector<8x128xf32>
    tpu.vector_store %arg8[%c0_17, %c0_18], %60 {strides = array<i32>} : memref<8x128xf32, #tpu.memory_space<vmem>>, vector<8x128xf32>,
    return
  }
  func.func @transform_0(%arg0: i32) -> (i32, i32) {
    %c0_i32 = arith.constant 0 : i32
    %c0_i32_0 = arith.constant 0 : i32
    %c0_i32_1 = arith.constant 0 : i32
    return %c0_i32, %c0_i32_0 : i32, i32
  }
  func.func @transform_1(%arg0: i32) -> (i32, i32, i32) {
    %c0_i32 = arith.constant 0 : i32
    %c0_i32_0 = arith.constant 0 : i32
    %c0_i32_1 = arith.constant 0 : i32
    return %arg0, %c0_i32, %c0_i32_0 : i32, i32, i32
  }
  func.func @transform_2(%arg0: i32) -> (i32, i32) {
    %c0_i32 = arith.constant 0 : i32
    %c0_i32_0 = arith.constant 0 : i32
    %c0_i32_1 = arith.constant 0 : i32
    return %c0_i32, %c0_i32_0 : i32, i32
  }
  func.func @transform_3(%arg0: i32) -> (i32, i32) {
    %c0_i32 = arith.constant 0 : i32
    %c0_i32_0 = arith.constant 0 : i32
    %c0_i32_1 = arith.constant 0 : i32
    return %c0_i32, %c0_i32_0 : i32, i32
  }
  func.func @transform_4(%arg0: i32) -> (i32, i32) {
    %c0_i32 = arith.constant 0 : i32
    %c0_i32_0 = arith.constant 0 : i32
    %c0_i32_1 = arith.constant 0 : i32
    return %c0_i32, %c0_i32_0 : i32, i32
  }
  func.func @transform_5(%arg0: i32) -> (i32, i32) {
    %c0_i32 = arith.constant 0 : i32
    %c0_i32_0 = arith.constant 0 : i32
    %c0_i32_1 = arith.constant 0 : i32
    return %c0_i32, %c0_i32_0 : i32, i32
  }
  func.func @transform_6(%arg0: i32) -> (i32, i32, i32) {
    %c0_i32 = arith.constant 0 : i32
    %c0_i32_0 = arith.constant 0 : i32
    %c0_i32_1 = arith.constant 0 : i32
    return %arg0, %c0_i32, %c0_i32_0 : i32, i32, i32
  }
}

</mosaic_0001>

<llo_original>
// kernel: tpu_custom_call.1
$region0: #{tpu_custom_call.1}
  #allocation0 [shape = 'u32[]', space=smem, size = 0x4, offset = 0x4, fixed_abs, tag = 'smem constant byte address 0x4 - core index']
  #allocation1 [shape = 'u32[144,128]{1,0:T(1,128)}', space=vmem, size = 0x12000, scoped, tag = 'internal scratch']
  #allocation2 [shape = 'f32[8,128]{1,0:T(8,128)}', space=vmem, size = 0x1000, scoped, tag = 'scratch operand']
  %s0 = inlined_call_operand.hbm [shape: f32[8,128], index: 0, kind: input, shape index: {}]
  %s1 = inlined_call_operand.hbm [shape: f32[8,8,8], index: 1, kind: input, shape index: {}]
  %s2 = inlined_call_operand.hbm [shape: f32[128,128], index: 2, kind: input, shape index: {}]
  %s3 = inlined_call_operand.vmem [shape: f32[1,128], index: 3, kind: input, shape index: {}]
  %s4 = inlined_call_operand.hbm [shape: f32[128,1024], index: 4, kind: input, shape index: {}]
  %s5 = inlined_call_operand.vmem [shape: f32[1,1024], index: 5, kind: input, shape index: {}]
  %s6 = inlined_call_operand.hbm [shape: f32[8,8,128], index: 6, kind: output, shape index: {}]
  %s7 = sld [smem:[#allocation0]]
  $region77: #{tpu_custom_call.1} parent=0
    _
  %s9 = ssub.s32 1, %s7
  %s10 = scalar_select 0, %s9, %s7
  $region1: #{tpu_custom_call.1} parent=0
    #allocation3 [shape = 'u8[4096]{0}', space=vmem, size = 0x1000, scoped, tag = 'input window, operand 0, single buffered']
    #allocation4 [shape = 's32[2]{0}', space=sflag, size = 0x8, scoped, tag = 'scoped memory for tpu_custom_call.1']
    #allocation5 [shape = 's32[2]{0}', space=sflag, size = 0x8, scoped, tag = 'scoped memory for tpu_custom_call.1']
    #allocation6 [shape = 'u8[8192]{0}', space=vmem, size = 0x2000, scoped, tag = 'input window, operand 1']
    #allocation7 [shape = 's32[2]{0}', space=sflag, size = 0x8, scoped, tag = 'scoped memory for tpu_custom_call.1']
    #allocation8 [shape = 'u8[65536]{0}', space=vmem, size = 0x10000, scoped, tag = 'input window, operand 2, single buffered']
    #allocation9 [shape = 'u8[524288]{0}', space=vmem, size = 0x80000, scoped, tag = 'input window, operand 4, single buffered']
    #allocation10 [shape = 's32[1]{0}', space=sflag, size = 0x4, scoped, tag = 'scoped memory for tpu_custom_call.1']
    #allocation11 [shape = 'u8[8192]{0}', space=vmem, size = 0x2000, scoped, tag = 'output window, operand 0']
    %11 = vsyncpa [#allocation4], 0
    %12 = vsyncpa [#allocation7], 0
    %s13 = scalar_lea.sflag [#allocation7], 1
    %14 = vsyncpa %s13, 0
    %15 = vsyncpa [#allocation10], 0
    %16 = vsyncpa [#allocation5], 0
    %s17 = scalar_lea.sflag [#allocation5], 1
    %18 = vsyncpa %s17, 0
    loop: start=0, step=1, limit=10
    $region2: #{tpu_custom_call.1} parent=1 // loop_pre_header
      _
    $region3: #{tpu_custom_call.1} parent=1 // loop_header
      %s20 = sphi 0, %s24
      %p21 = scmp.ge.s32.totalorder %s20, 10
      %s28 = sphi 0, %s28
      %s30 = sphi 0, %s28
      %s31 = sphi 0, %s30
      %s45 = sphi 0, %s31
      %s51 = sphi 0, %s53
      %s54 = sphi 0, %s51
      %s55 = sphi 0, %s54
      %s71 = sphi 0, %s55
      %s75 = sphi 0, %s75
      %s77 = sphi 0, %s75
      %s78 = sphi 0, %s77
      %s92 = sphi 0, %s78
      %s96 = sphi 0, %s96
      %s98 = sphi 0, %s96
      %s99 = sphi 0, %s98
      %s113 = sphi 0, %s99
      %s117 = sphi 0, %s117
      %s119 = sphi 0, %s117
      %s120 = sphi 0, %s119
      %s134 = sphi 0, %s120
      %s138 = sphi 0, %s138
      %s140 = sphi 0, %s138
      %s141 = sphi 0, %s140
      %s155 = sphi 0, %s141
      %s161 = sphi 0, %s163
      %s164 = sphi 0, %s161
      %s165 = sphi 0, %s164
      %s181 = sphi 0, %s165
    $region4: #{tpu_custom_call.1} parent=1 // loop_header_branch
      %23 = sbr.rel (%p21) target = $region8
    $region5: #{tpu_custom_call.1} parent=1 // loop_body
      %s25 = ssub.s32 %s20, 1
      %s26 = ssub.s32 %s20, 2
      %s27 = sadd.s32 %s20, 1
      %s29 = sadd.s32 %s28, 1
      %p32 = scmp.eq.s32.totalorder %s20, 7
      %p33 = scmp.ne.s32.totalorder %s28, %s30
      %p34 = scmp.eq.s32.totalorder %s20, 0
      %p35 = por %p33, %p34
      %p36 = scmp.ne.s32.totalorder %s28, %s30
      %p37 = scmp.eq.s32.totalorder %s25, 7
      %p38 = por %p36, %p37
      %p39 = scmp.ne.s32.totalorder %s30, %s31
      %p40 = scmp.eq.s32.totalorder %s25, 0
      %p41 = por %p39, %p40
      %p42 = scmp.ne.s32.totalorder %s30, %s31
      %p43 = scmp.eq.s32.totalorder %s26, 7
      %p44 = por %p42, %p43
      %p46 = scmp.ne.s32.totalorder %s31, %s45
      %p47 = scmp.eq.s32.totalorder %s26, 0
      %p48 = por %p46, %p47
      %s49 = ssub.s32 %s20, %s27
      %p50 = scmp.eq.s32.totalorder %s49, 0
      %s52 = sadd.s32 %s51, 1
      %s53 = scalar_select %p50, %s51, %s52
      %p56 = pneg %p50
      %p57 = scmp.eq.s32.totalorder %s20, 7
      %p58 = por %p56, %p57
      %p59 = scmp.ne.s32.totalorder %s51, %s54
      %p60 = scmp.eq.s32.totalorder %s20, 0
      %p61 = por %p59, %p60
      %p62 = scmp.ne.s32.totalorder %s51, %s54
      %p63 = scmp.eq.s32.totalorder %s25, 7
      %p64 = por %p62, %p63
      %p65 = scmp.ne.s32.totalorder %s54, %s55
      %p66 = scmp.eq.s32.totalorder %s25, 0
      %p67 = por %p65, %p66
      %p68 = scmp.ne.s32.totalorder %s54, %s55
      %p69 = scmp.eq.s32.totalorder %s26, 7
      %p70 = por %p68, %p69
      %p72 = scmp.ne.s32.totalorder %s55, %s71
      %p73 = scmp.eq.s32.totalorder %s26, 0
      %p74 = por %p72, %p73
      %s76 = sadd.s32 %s75, 1
      %p79 = scmp.eq.s32.totalorder %s20, 7
      %p80 = scmp.ne.s32.totalorder %s75, %s77
      %p81 = scmp.eq.s32.totalorder %s20, 0
      %p82 = por %p80, %p81
      %p83 = scmp.ne.s32.totalorder %s75, %s77
      %p84 = scmp.eq.s32.totalorder %s25, 7
      %p85 = por %p83, %p84
      %p86 = scmp.ne.s32.totalorder %s77, %s78
      %p87 = scmp.eq.s32.totalorder %s25, 0
      %p88 = por %p86, %p87
      %p89 = scmp.ne.s32.totalorder %s77, %s78
      %p90 = scmp.eq.s32.totalorder %s26, 7
      %p91 = por %p89, %p90
      %p93 = scmp.ne.s32.totalorder %s78, %s92
      %p94 = scmp.eq.s32.totalorder %s26, 0
      %p95 = por %p93, %p94
      %s97 = sadd.s32 %s96, 1
      %p100 = scmp.eq.s32.totalorder %s20, 7
      %p101 = scmp.ne.s32.totalorder %s96, %s98
      %p102 = scmp.eq.s32.totalorder %s20, 0
      %p103 = por %p101, %p102
      %p104 = scmp.ne.s32.totalorder %s96, %s98
      %p105 = scmp.eq.s32.totalorder %s25, 7
      %p106 = por %p104, %p105
      %p107 = scmp.ne.s32.totalorder %s98, %s99
      %p108 = scmp.eq.s32.totalorder %s25, 0
      %p109 = por %p107, %p108
      %p110 = scmp.ne.s32.totalorder %s98, %s99
      %p111 = scmp.eq.s32.totalorder %s26, 7
      %p112 = por %p110, %p111
      %p114 = scmp.ne.s32.totalorder %s99, %s113
      %p115 = scmp.eq.s32.totalorder %s26, 0
      %p116 = por %p114, %p115
      %s118 = sadd.s32 %s117, 1
      %p121 = scmp.eq.s32.totalorder %s20, 7
      %p122 = scmp.ne.s32.totalorder %s117, %s119
      %p123 = scmp.eq.s32.totalorder %s20, 0
      %p124 = por %p122, %p123
      %p125 = scmp.ne.s32.totalorder %s117, %s119
      %p126 = scmp.eq.s32.totalorder %s25, 7
      %p127 = por %p125, %p126
      %p128 = scmp.ne.s32.totalorder %s119, %s120
      %p129 = scmp.eq.s32.totalorder %s25, 0
      %p130 = por %p128, %p129
      %p131 = scmp.ne.s32.totalorder %s119, %s120
      %p132 = scmp.eq.s32.totalorder %s26, 7
      %p133 = por %p131, %p132
      %p135 = scmp.ne.s32.totalorder %s120, %s134
      %p136 = scmp.eq.s32.totalorder %s26, 0
      %p137 = por %p135, %p136
      %s139 = sadd.s32 %s138, 1
      %p142 = scmp.eq.s32.totalorder %s20, 7
      %p143 = scmp.ne.s32.totalorder %s138, %s140
      %p144 = scmp.eq.s32.totalorder %s20, 0
      %p145 = por %p143, %p144
      %p146 = scmp.ne.s32.totalorder %s138, %s140
      %p147 = scmp.eq.s32.totalorder %s25, 7
      %p148 = por %p146, %p147
      %p149 = scmp.ne.s32.totalorder %s140, %s141
      %p150 = scmp.eq.s32.totalorder %s25, 0
      %p151 = por %p149, %p150
      %p152 = scmp.ne.s32.totalorder %s140, %s141
      %p153 = scmp.eq.s32.totalorder %s26, 7
      %p154 = por %p152, %p153
      %p156 = scmp.ne.s32.totalorder %s141, %s155
      %p157 = scmp.eq.s32.totalorder %s26, 0
      %p158 = por %p156, %p157
      %s159 = ssub.s32 %s20, %s27
      %p160 = scmp.eq.s32.totalorder %s159, 0
      %s162 = sadd.s32 %s161, 1
      %s163 = scalar_select %p160, %s161, %s162
      %p166 = pneg %p160
      %p167 = scmp.eq.s32.totalorder %s20, 7
      %p168 = por %p166, %p167
      %p169 = scmp.ne.s32.totalorder %s161, %s164
      %p170 = scmp.eq.s32.totalorder %s20, 0
      %p171 = por %p169, %p170
      %p172 = scmp.ne.s32.totalorder %s161, %s164
      %p173 = scmp.eq.s32.totalorder %s25, 7
      %p174 = por %p172, %p173
      %p175 = scmp.ne.s32.totalorder %s164, %s165
      %p176 = scmp.eq.s32.totalorder %s25, 0
      %p177 = por %p175, %p176
      %p178 = scmp.ne.s32.totalorder %s164, %s165
      %p179 = scmp.eq.s32.totalorder %s26, 7
      %p180 = por %p178, %p179
      %p182 = scmp.ne.s32.totalorder %s165, %s181
      %p183 = scmp.eq.s32.totalorder %s26, 0
      %p184 = por %p182, %p183
      %p185 = scmp.le.s32.totalorder 1, %s20
      %p186 = scmp.lt.s32.totalorder %s20, 9
      %p187 = pnand %p185, %p186
      %p188 = pneg %p187
      // Predicated region
      $region9: #{tpu_custom_call.1} parent=5 // pred_check
        _
      $region10: #{tpu_custom_call.1} parent=5 // pred_check_branch
        %190 = sbr.rel (%p187) target = $region12
      $region11: #{tpu_custom_call.1} parent=5 // pred_region
        %s191 = ssub.s32 %s20, 1
        // Predicated region
        $region13: #{tpu_custom_call.1} parent=11 // pred_check
          %p192 = pneg %p41
        $region14: #{tpu_custom_call.1} parent=11 // pred_check_branch
          %194 = sbr.rel (%p192) target = $region16
        $region15: #{tpu_custom_call.1} parent=11 // pred_region
          %s196 = ssub.s32 128, 128
          %197 = vsyncadd [#allocation4], %s196
          %s199 = sshll.u32 [#allocation3], 4
          %s200 = int_to_ptr.vmem [resolvable:$true] %s199
          %202 = dma.hbm_to_vmem [thread:$0]  %s0, 128, %s200, [#allocation4]
        $region16: #{tpu_custom_call.1} parent=11 // pred_fallthru
          _
        // Predicated region
        $region17: #{tpu_custom_call.1} parent=11 // pred_check
          %p203 = pneg %p88
        $region18: #{tpu_custom_call.1} parent=11 // pred_check_branch
          %205 = sbr.rel (%p203) target = $region20
        $region19: #{tpu_custom_call.1} parent=11 // pred_region
          %s207 = ssub.s32 2048, 2048
          %208 = vsyncadd [#allocation7], %s207
          %s209 = sshll.u32 [#allocation8], 4
          %s210 = int_to_ptr.vmem [resolvable:$true] %s209
          %215 = dma.hbm_to_vmem [thread:$0]  %s2, 2048, %s210, [#allocation7], 128, 128, 8
        $region20: #{tpu_custom_call.1} parent=11 // pred_fallthru
          _
        // Predicated region
        $region21: #{tpu_custom_call.1} parent=11 // pred_check
          %p216 = pneg %p109
        $region22: #{tpu_custom_call.1} parent=11 // pred_check_branch
          %218 = sbr.rel (%p216) target = $region24
        $region23: #{tpu_custom_call.1} parent=11 // pred_region
          _
        $region24: #{tpu_custom_call.1} parent=11 // pred_fallthru
          _
        // Predicated region
        $region25: #{tpu_custom_call.1} parent=11 // pred_check
          %p219 = pneg %p130
        $region26: #{tpu_custom_call.1} parent=11 // pred_check_branch
          %221 = sbr.rel (%p219) target = $region28
        $region27: #{tpu_custom_call.1} parent=11 // pred_region
          %s223 = ssub.s32 16384, 16384
          %224 = vsyncadd [#allocation10], %s223
          %s225 = sshll.u32 [#allocation9], 4
          %s226 = int_to_ptr.vmem [resolvable:$true] %s225
          %231 = dma.hbm_to_vmem [thread:$0]  %s4, 16384, %s226, [#allocation10], 1024, 1024, 64
        $region28: #{tpu_custom_call.1} parent=11 // pred_fallthru
          _
        // Predicated region
        $region29: #{tpu_custom_call.1} parent=11 // pred_check
          %p232 = pneg %p151
        $region30: #{tpu_custom_call.1} parent=11 // pred_check_branch
          %234 = sbr.rel (%p232) target = $region32
        $region31: #{tpu_custom_call.1} parent=11 // pred_region
          _
        $region32: #{tpu_custom_call.1} parent=11 // pred_fallthru
          _
      $region12: #{tpu_custom_call.1} parent=5 // pred_fallthru
        _
      %p235 = scmp.lt.s32.totalorder %s20, 8
      // Predicated region
      $region33: #{tpu_custom_call.1} parent=5 // pred_check
        %p236 = pneg %p235
      $region34: #{tpu_custom_call.1} parent=5 // pred_check_branch
        %238 = sbr.rel (%p236) target = $region36
      $region35: #{tpu_custom_call.1} parent=5 // pred_region
        // Predicated region
        $region37: #{tpu_custom_call.1} parent=35 // pred_check
          %p239 = pneg %p61
        $region38: #{tpu_custom_call.1} parent=35 // pred_check_branch
          %241 = sbr.rel (%p239) target = $region40
        $region39: #{tpu_custom_call.1} parent=35 // pred_region
          %s242 = sand.u32 %s20, 1
          %s243 = scalar_lea.sflag [#allocation7], %s242
          %s244 = sand.u32 %s51, 1
          %s245 = smul.addr %s244, 8
          %s246 = scalar_lea.vmem [#allocation6], %s245
          %s248 = ssub.s32 128, 128
          %249 = vsyncadd %s243, %s248
          %s250 = smul.addr %s20, 128
          %s251 = scalar_lea.hbm %s1, %s250
          %s253 = sshll.u32 %s246, 4
          %s254 = int_to_ptr.vmem [resolvable:$true] %s253
          %256 = dma.hbm_to_vmem [thread:$0]  %s251, 128, %s254, %s243
        $region40: #{tpu_custom_call.1} parent=35 // pred_fallthru
          _
      $region36: #{tpu_custom_call.1} parent=5 // pred_fallthru
        _
      %p257 = scmp.le.s32.totalorder 1, %s20
      %p258 = scmp.lt.s32.totalorder %s20, 9
      %p259 = pnand %p257, %p258
      %p260 = pneg %p259
      // Predicated region
      $region41: #{tpu_custom_call.1} parent=5 // pred_check
        _
      $region42: #{tpu_custom_call.1} parent=5 // pred_check_branch
        %262 = sbr.rel (%p259) target = $region44
      $region43: #{tpu_custom_call.1} parent=5 // pred_region
        %s263 = ssub.s32 %s20, 1
        // Predicated region
        $region45: #{tpu_custom_call.1} parent=43 // pred_check
          %p264 = pneg %p41
        $region46: #{tpu_custom_call.1} parent=43 // pred_check_branch
          %266 = sbr.rel (%p264) target = $region48
        $region47: #{tpu_custom_call.1} parent=43 // pred_region
          %267 = dma.done [#allocation4], 128
        $region48: #{tpu_custom_call.1} parent=43 // pred_fallthru
          _
        %s268 = sand.u32 %s25, 1
        %s269 = scalar_lea.sflag [#allocation7], %s268
        %s270 = sand.u32 %s54, 1
        %s271 = smul.addr %s270, 8
        %s272 = scalar_lea.vmem [#allocation6], %s271
        // Predicated region
        $region49: #{tpu_custom_call.1} parent=43 // pred_check
          %p273 = pneg %p67
        $region50: #{tpu_custom_call.1} parent=43 // pred_check_branch
          %275 = sbr.rel (%p273) target = $region52
        $region51: #{tpu_custom_call.1} parent=43 // pred_region
          %276 = dma.done %s269, 128
        $region52: #{tpu_custom_call.1} parent=43 // pred_fallthru
          _
        // Predicated region
        $region53: #{tpu_custom_call.1} parent=43 // pred_check
          %p277 = pneg %p88
        $region54: #{tpu_custom_call.1} parent=43 // pred_check_branch
          %279 = sbr.rel (%p277) target = $region56
        $region55: #{tpu_custom_call.1} parent=43 // pred_region
          %280 = dma.done [#allocation7], 2048
        $region56: #{tpu_custom_call.1} parent=43 // pred_fallthru
          _
        // Predicated region
        $region57: #{tpu_custom_call.1} parent=43 // pred_check
          %p281 = pneg %p130
        $region58: #{tpu_custom_call.1} parent=43 // pred_check_branch
          %283 = sbr.rel (%p281) target = $region60
        $region59: #{tpu_custom_call.1} parent=43 // pred_region
          %284 = dma.done [#allocation10], 16384
        $region60: #{tpu_custom_call.1} parent=43 // pred_fallthru
          _
        %p285 = pneg %p41
        %p286 = pneg %p38
        %s287 = sand.u32 %s25, 1
        %s288 = scalar_lea.sflag [#allocation7], %s287
        %s289 = sand.u32 %s54, 1
        %s290 = smul.addr %s289, 8
        %s291 = scalar_lea.vmem [#allocation6], %s290
        %p292 = pneg %p67
        %p293 = pneg %p64
        %p294 = pneg %p88
        %p295 = pneg %p85
        %p296 = pneg %p109
        %p297 = pneg %p106
        %p298 = pneg %p130
        %p299 = pneg %p127
        %p300 = pneg %p151
        %p301 = pneg %p148
        %p302 = pneg %p177
        %p303 = pneg %p174
        %s304 = sand.u32 %s164, 1
        %s305 = scalar_lea.sflag [#allocation5], %s304
        %s306 = sand.u32 %s164, 1
        %s307 = smul.addr %s306, 8
        %s308 = scalar_lea.vmem [#allocation11], %s307
        %p309 = scmp.eq.s32.totalorder %s25, 0
        // Predicated region
        $region61: #{tpu_custom_call.1} parent=43 // pred_check
          %p310 = pneg %p309
        $region62: #{tpu_custom_call.1} parent=43 // pred_check_branch
          %312 = sbr.rel (%p310) target = $region64
        $region63: #{tpu_custom_call.1} parent=43 // pred_region
          %v313 = vld [vmem:[#allocation3] sm:$0xff]
          %314 = vst [vmem:[#allocation2] sm:$0xff] %v313
        $region64: #{tpu_custom_call.1} parent=43 // pred_fallthru
          _
        %v315 = vld [vmem:[#allocation2] sm:$0xff]
        %v316 = vld [vmem:[#allocation8] sm:$0xff]
        %v317 = vld [vmem:[#allocation8 + $0x8] sm:$0xff]
        %v318 = vld [vmem:[#allocation8 + $0x10] sm:$0xff]
        %v319 = vld [vmem:[#allocation8 + $0x18] sm:$0xff]
        %v320 = vld [vmem:[#allocation8 + $0x20] sm:$0xff]
        %v321 = vld [vmem:[#allocation8 + $0x28] sm:$0xff]
        %v322 = vld [vmem:[#allocation8 + $0x30] sm:$0xff]
        %v323 = vld [vmem:[#allocation8 + $0x38] sm:$0xff]
        %v324 = vld [vmem:[#allocation8 + $0x40] sm:$0xff]
        %v325 = vld [vmem:[#allocation8 + $0x48] sm:$0xff]
        %v326 = vld [vmem:[#allocation8 + $0x50] sm:$0xff]
        %v327 = vld [vmem:[#allocation8 + $0x58] sm:$0xff]
        %v328 = vld [vmem:[#allocation8 + $0x60] sm:$0xff]
        %v329 = vld [vmem:[#allocation8 + $0x68] sm:$0xff]
        %v330 = vld [vmem:[#allocation8 + $0x70] sm:$0xff]
        %v331 = vld [vmem:[#allocation8 + $0x78] sm:$0xff]
        %v332 = vld [vmem:[%s3] sm:$0x1]
        %v334 = vlaneseq
        %v335 = vshrl.u32 %v334, 7
        %v336 = vsub.s32 0, %v335
        %v337 = vrot.slane %v332, %v336
        %339 = vmatprep.subr.mxu0 0.0
        %340 = vmatpush1.msra.mxu0 %v331
        %341 = vmatprep.subr.mxu0 0.0
        %342 = vmatpush1.msra.mxu0 %v330
        %343 = vmatprep.subr.mxu0 0.0
        %344 = vmatpush1.msra.mxu0 %v329
        %345 = vmatprep.subr.mxu0 0.0
        %346 = vmatpush1.msra.mxu0 %v328
        %347 = vmatprep.subr.mxu0 0.0
        %348 = vmatpush1.msra.mxu0 %v327
        %349 = vmatprep.subr.mxu0 0.0
        %350 = vmatpush1.msra.mxu0 %v326
        %351 = vmatprep.subr.mxu0 0.0
        %352 = vmatpush1.msra.mxu0 %v325
        %353 = vmatprep.subr.mxu0 0.0
        %354 = vmatpush1.msra.mxu0 %v324
        %355 = vmatprep.subr.mxu0 0.0
        %356 = vmatpush1.msra.mxu0 %v323
        %357 = vmatprep.subr.mxu0 0.0
        %358 = vmatpush1.msra.mxu0 %v322
        %359 = vmatprep.subr.mxu0 0.0
        %360 = vmatpush1.msra.mxu0 %v321
        %361 = vmatprep.subr.mxu0 0.0
        %362 = vmatpush1.msra.mxu0 %v320
        %363 = vmatprep.subr.mxu0 0.0
        %364 = vmatpush1.msra.mxu0 %v319
        %365 = vmatprep.subr.mxu0 0.0
        %366 = vmatpush1.msra.mxu0 %v318
        %367 = vmatprep.subr.mxu0 0.0
        %368 = vmatpush1.msra.mxu0 %v317
        %369 = vmatprep.subr.mxu0 0.0
        %370 = vmatpush1.msra.mxu0 %v316
        %371 = vmatprep.subr.mxu0 0.0
        %372 = vmatpush2.msra.mxu0 0.0
        %373 = vmatprep.subr.mxu0 0.0
        %374 = vmatpush2.msra.mxu0 0.0
        %375 = vmatprep.subr.mxu0 0.0
        %376 = vmatpush2.msra.mxu0 0.0
        %377 = vmatprep.subr.mxu0 0.0
        %378 = vmatpush2.msra.mxu0 0.0
        %379 = vmatprep.subr.mxu0 0.0
        %380 = vmatpush2.msra.mxu0 0.0
        %381 = vmatprep.subr.mxu0 0.0
        %382 = vmatpush2.msra.mxu0 0.0
        %383 = vmatprep.subr.mxu0 0.0
        %384 = vmatpush2.msra.mxu0 0.0
        %385 = vmatprep.subr.mxu0 0.0
        %386 = vmatpush2.msra.mxu0 0.0
        %387 = vmatprep.subr.mxu0 0.0
        %388 = vmatpush2.msra.mxu0 0.0
        %389 = vmatprep.subr.mxu0 0.0
        %390 = vmatpush2.msra.mxu0 0.0
        %391 = vmatprep.subr.mxu0 0.0
        %392 = vmatpush2.msra.mxu0 0.0
        %393 = vmatprep.subr.mxu0 0.0
        %394 = vmatpush2.msra.mxu0 0.0
        %395 = vmatprep.subr.mxu0 0.0
        %396 = vmatpush2.msra.mxu0 0.0
        %397 = vmatprep.subr.mxu0 0.0
        %398 = vmatpush2.msra.mxu0 0.0
        %399 = vmatprep.subr.mxu0 0.0
        %400 = vmatpush2.msra.mxu0 0.0
        %401 = vmatprep.subr.mxu0 0.0
        %402 = vmatpush2.msra.mxu0 0.0
        %403 = vmatprep.mubr.f32.mxu0 0.0
        %404 = vmatmul.mubr.f32.gmra.mxu0 %v315
        %v405 = vpop.f32.mrf.mxu0
        %v406 = vadd.f32 %v337, %v405
        %v407 = vpop.f32.mrf.mxu0
        %408 = vdwg.mxu0
        %v409 = vtanh.pop %v406
        %v410 = vld [vmem:[#allocation9] sm:$0xff]
        %v411 = vld [vmem:[#allocation9 + $0x8] sm:$0xff]
        %v412 = vld [vmem:[#allocation9 + $0x10] sm:$0xff]
        %v413 = vld [vmem:[#allocation9 + $0x18] sm:$0xff]
        %v414 = vld [vmem:[#allocation9 + $0x20] sm:$0xff]
        %v415 = vld [vmem:[#allocation9 + $0x28] sm:$0xff]
        %v416 = vld [vmem:[#allocation9 + $0x30] sm:$0xff]
        %v417 = vld [vmem:[#allocation9 + $0x38] sm:$0xff]
        %v418 = vld [vmem:[#allocation9 + $0x40] sm:$0xff]
        %v419 = vld [vmem:[#allocation9 + $0x48] sm:$0xff]
        %v420 = vld [vmem:[#allocation9 + $0x50] sm:$0xff]
        %v421 = vld [vmem:[#allocation9 + $0x58] sm:$0xff]
        %v422 = vld [vmem:[#allocation9 + $0x60] sm:$0xff]
        %v423 = vld [vmem:[#allocation9 + $0x68] sm:$0xff]
        %v424 = vld [vmem:[#allocation9 + $0x70] sm:$0xff]
        %v425 = vld [vmem:[#allocation9 + $0x78] sm:$0xff]
        %v426 = vld [vmem:[#allocation9 + $0x80] sm:$0xff]
        %v427 = vld [vmem:[#allocation9 + $0x88] sm:$0xff]
        %v428 = vld [vmem:[#allocation9 + $0x90] sm:$0xff]
        %v429 = vld [vmem:[#allocation9 + $0x98] sm:$0xff]
        %v430 = vld [vmem:[#allocation9 + $0xa0] sm:$0xff]
        %v431 = vld [vmem:[#allocation9 + $0xa8] sm:$0xff]
        %v432 = vld [vmem:[#allocation9 + $0xb0] sm:$0xff]
        %v433 = vld [vmem:[#allocation9 + $0xb8] sm:$0xff]
        %v434 = vld [vmem:[#allocation9 + $0xc0] sm:$0xff]
        %v435 = vld [vmem:[#allocation9 + $0xc8] sm:$0xff]
        %v436 = vld [vmem:[#allocation9 + $0xd0] sm:$0xff]
        %v437 = vld [vmem:[#allocation9 + $0xd8] sm:$0xff]
        %v438 = vld [vmem:[#allocation9 + $0xe0] sm:$0xff]
        %v439 = vld [vmem:[#allocation9 + $0xe8] sm:$0xff]
        %v440 = vld [vmem:[#allocation9 + $0xf0] sm:$0xff]
        %v441 = vld [vmem:[#allocation9 + $0xf8] sm:$0xff]
        %v442 = vld [vmem:[#allocation9 + $0x100] sm:$0xff]
        %v443 = vld [vmem:[#allocation9 + $0x108] sm:$0xff]
        %v444 = vld [vmem:[#allocation9 + $0x110] sm:$0xff]
        %v445 = vld [vmem:[#allocation9 + $0x118] sm:$0xff]
        %v446 = vld [vmem:[#allocation9 + $0x120] sm:$0xff]
        %v447 = vld [vmem:[#allocation9 + $0x128] sm:$0xff]
        %v448 = vld [vmem:[#allocation9 + $0x130] sm:$0xff]
        %v449 = vld [vmem:[#allocation9 + $0x138] sm:$0xff]
        %v450 = vld [vmem:[#allocation9 + $0x140] sm:$0xff]
        %v451 = vld [vmem:[#allocation9 + $0x148] sm:$0xff]
        %v452 = vld [vmem:[#allocation9 + $0x150] sm:$0xff]
        %v453 = vld [vmem:[#allocation9 + $0x158] sm:$0xff]
        %v454 = vld [vmem:[#allocation9 + $0x160] sm:$0xff]
        %v455 = vld [vmem:[#allocation9 + $0x168] sm:$0xff]
        %v456 = vld [vmem:[#allocation9 + $0x170] sm:$0xff]
        %v457 = vld [vmem:[#allocation9 + $0x178] sm:$0xff]
        %v458 = vld [vmem:[#allocation9 + $0x180] sm:$0xff]
        %v459 = vld [vmem:[#allocation9 + $0x188] sm:$0xff]
        %v460 = vld [vmem:[#allocation9 + $0x190] sm:$0xff]
        %v461 = vld [vmem:[#allocation9 + $0x198] sm:$0xff]
        %v462 = vld [vmem:[#allocation9 + $0x1a0] sm:$0xff]
        %v463 = vld [vmem:[#allocation9 + $0x1a8] sm:$0xff]
        %v464 = vld [vmem:[#allocation9 + $0x1b0] sm:$0xff]
        %v465 = vld [vmem:[#allocation9 + $0x1b8] sm:$0xff]
        %v466 = vld [vmem:[#allocation9 + $0x1c0] sm:$0xff]
        %v467 = vld [vmem:[#allocation9 + $0x1c8] sm:$0xff]
        %v468 = vld [vmem:[#allocation9 + $0x1d0] sm:$0xff]
        %v469 = vld [vmem:[#allocation9 + $0x1d8] sm:$0xff]
        %v470 = vld [vmem:[#allocation9 + $0x1e0] sm:$0xff]
        %v471 = vld [vmem:[#allocation9 + $0x1e8] sm:$0xff]
        %v472 = vld [vmem:[#allocation9 + $0x1f0] sm:$0xff]
        %v473 = vld [vmem:[#allocation9 + $0x1f8] sm:$0xff]
        %v474 = vld [vmem:[#allocation9 + $0x200] sm:$0xff]
        %v475 = vld [vmem:[#allocation9 + $0x208] sm:$0xff]
        %v476 = vld [vmem:[#allocation9 + $0x210] sm:$0xff]
        %v477 = vld [vmem:[#allocation9 + $0x218] sm:$0xff]
        %v478 = vld [vmem:[#allocation9 + $0x220] sm:$0xff]
        %v479 = vld [vmem:[#allocation9 + $0x228] sm:$0xff]
        %v480 = vld [vmem:[#allocation9 + $0x230] sm:$0xff]
        %v481 = vld [vmem:[#allocation9 + $0x238] sm:$0xff]
        %v482 = vld [vmem:[#allocation9 + $0x240] sm:$0xff]
        %v483 = vld [vmem:[#allocation9 + $0x248] sm:$0xff]
        %v484 = vld [vmem:[#allocation9 + $0x250] sm:$0xff]
        %v485 = vld [vmem:[#allocation9 + $0x258] sm:$0xff]
        %v486 = vld [vmem:[#allocation9 + $0x260] sm:$0xff]
        %v487 = vld [vmem:[#allocation9 + $0x268] sm:$0xff]
        %v488 = vld [vmem:[#allocation9 + $0x270] sm:$0xff]
        %v489 = vld [vmem:[#allocation9 + $0x278] sm:$0xff]
        %v490 = vld [vmem:[#allocation9 + $0x280] sm:$0xff]
        %v491 = vld [vmem:[#allocation9 + $0x288] sm:$0xff]
        %v492 = vld [vmem:[#allocation9 + $0x290] sm:$0xff]
        %v493 = vld [vmem:[#allocation9 + $0x298] sm:$0xff]
        %v494 = vld [vmem:[#allocation9 + $0x2a0] sm:$0xff]
        %v495 = vld [vmem:[#allocation9 + $0x2a8] sm:$0xff]
        %v496 = vld [vmem:[#allocation9 + $0x2b0] sm:$0xff]
        %v497 = vld [vmem:[#allocation9 + $0x2b8] sm:$0xff]
        %v498 = vld [vmem:[#allocation9 + $0x2c0] sm:$0xff]
        %v499 = vld [vmem:[#allocation9 + $0x2c8] sm:$0xff]
        %v500 = vld [vmem:[#allocation9 + $0x2d0] sm:$0xff]
        %v501 = vld [vmem:[#allocation9 + $0x2d8] sm:$0xff]
        %v502 = vld [vmem:[#allocation9 + $0x2e0] sm:$0xff]
        %v503 = vld [vmem:[#allocation9 + $0x2e8] sm:$0xff]
        %v504 = vld [vmem:[#allocation9 + $0x2f0] sm:$0xff]
        %v505 = vld [vmem:[#allocation9 + $0x2f8] sm:$0xff]
        %v506 = vld [vmem:[#allocation9 + $0x300] sm:$0xff]
        %v507 = vld [vmem:[#allocation9 + $0x308] sm:$0xff]
        %v508 = vld [vmem:[#allocation9 + $0x310] sm:$0xff]
        %v509 = vld [vmem:[#allocation9 + $0x318] sm:$0xff]
        %v510 = vld [vmem:[#allocation9 + $0x320] sm:$0xff]
        %v511 = vld [vmem:[#allocation9 + $0x328] sm:$0xff]
        %v512 = vld [vmem:[#allocation9 + $0x330] sm:$0xff]
        %v513 = vld [vmem:[#allocation9 + $0x338] sm:$0xff]
        %v514 = vld [vmem:[#allocation9 + $0x340] sm:$0xff]
        %v515 = vld [vmem:[#allocation9 + $0x348] sm:$0xff]
        %v516 = vld [vmem:[#allocation9 + $0x350] sm:$0xff]
        %v517 = vld [vmem:[#allocation9 + $0x358] sm:$0xff]
        %v518 = vld [vmem:[#allocation9 + $0x360] sm:$0xff]
        %v519 = vld [vmem:[#allocation9 + $0x368] sm:$0xff]
        %v520 = vld [vmem:[#allocation9 + $0x370] sm:$0xff]
        %v521 = vld [vmem:[#allocation9 + $0x378] sm:$0xff]
        %v522 = vld [vmem:[#allocation9 + $0x380] sm:$0xff]
        %v523 = vld [vmem:[#allocation9 + $0x388] sm:$0xff]
        %v524 = vld [vmem:[#allocation9 + $0x390] sm:$0xff]
        %v525 = vld [vmem:[#allocation9 + $0x398] sm:$0xff]
        %v526 = vld [vmem:[#allocation9 + $0x3a0] sm:$0xff]
        %v527 = vld [vmem:[#allocation9 + $0x3a8] sm:$0xff]
        %v528 = vld [vmem:[#allocation9 + $0x3b0] sm:$0xff]
        %v529 = vld [vmem:[#allocation9 + $0x3b8] sm:$0xff]
        %v530 = vld [vmem:[#allocation9 + $0x3c0] sm:$0xff]
        %v531 = vld [vmem:[#allocation9 + $0x3c8] sm:$0xff]
        %v532 = vld [vmem:[#allocation9 + $0x3d0] sm:$0xff]
        %v533 = vld [vmem:[#allocation9 + $0x3d8] sm:$0xff]
        %v534 = vld [vmem:[#allocation9 + $0x3e0] sm:$0xff]
        %v535 = vld [vmem:[#allocation9 + $0x3e8] sm:$0xff]
        %v536 = vld [vmem:[#allocation9 + $0x3f0] sm:$0xff]
        %v537 = vld [vmem:[#allocation9 + $0x3f8] sm:$0xff]
        %v538 = vld [vmem:[%s5] sm:$0xff]
        %v540 = vlaneseq
        %v541 = vshrl.u32 %v540, 7
        %v542 = vsub.s32 0, %v541
        %v543 = vrot.slane %v538, %v542
        %v544 = vlaneseq
        %v545 = vshrl.u32 %v544, 7
        %v546 = vsub.s32 1, %v545
        %v547 = vrot.slane %v538, %v546
        %v548 = vlaneseq
        %v549 = vshrl.u32 %v548, 7
        %v550 = vsub.s32 2, %v549
        %v551 = vrot.slane %v538, %v550
        %v552 = vlaneseq
        %v553 = vshrl.u32 %v552, 7
        %v554 = vsub.s32 3, %v553
        %v555 = vrot.slane %v538, %v554
        %v556 = vlaneseq
        %v557 = vshrl.u32 %v556, 7
        %v558 = vsub.s32 4, %v557
        %v559 = vrot.slane %v538, %v558
        %v560 = vlaneseq
        %v561 = vshrl.u32 %v560, 7
        %v562 = vsub.s32 5, %v561
        %v563 = vrot.slane %v538, %v562
        %v564 = vlaneseq
        %v565 = vshrl.u32 %v564, 7
        %v566 = vsub.s32 6, %v565
        %v567 = vrot.slane %v538, %v566
        %v568 = vlaneseq
        %v569 = vshrl.u32 %v568, 7
        %v570 = vsub.s32 7, %v569
        %v571 = vrot.slane %v538, %v570
        %580 = vmatprep.subr.mxu0 %v531
        %581 = vmatpush1.msra.mxu0 %v530
        %582 = vmatprep.subr.mxu0 %v523
        %583 = vmatpush1.msra.mxu0 %v522
        %584 = vmatprep.subr.mxu0 %v515
        %585 = vmatpush1.msra.mxu0 %v514
        %586 = vmatprep.subr.mxu0 %v507
        %587 = vmatpush1.msra.mxu0 %v506
        %588 = vmatprep.subr.mxu0 %v499
        %589 = vmatpush1.msra.mxu0 %v498
        %590 = vmatprep.subr.mxu0 %v491
        %591 = vmatpush1.msra.mxu0 %v490
        %592 = vmatprep.subr.mxu0 %v483
        %593 = vmatpush1.msra.mxu0 %v482
        %594 = vmatprep.subr.mxu0 %v475
        %595 = vmatpush1.msra.mxu0 %v474
        %596 = vmatprep.subr.mxu0 %v467
        %597 = vmatpush1.msra.mxu0 %v466
        %598 = vmatprep.subr.mxu0 %v459
        %599 = vmatpush1.msra.mxu0 %v458
        %600 = vmatprep.subr.mxu0 %v451
        %601 = vmatpush1.msra.mxu0 %v450
        %602 = vmatprep.subr.mxu0 %v443
        %603 = vmatpush1.msra.mxu0 %v442
        %604 = vmatprep.subr.mxu0 %v435
        %605 = vmatpush1.msra.mxu0 %v434
        %606 = vmatprep.subr.mxu0 %v427
        %607 = vmatpush1.msra.mxu0 %v426
        %608 = vmatprep.subr.mxu0 %v419
        %609 = vmatpush1.msra.mxu0 %v418
        %610 = vmatprep.subr.mxu0 %v411
        %611 = vmatpush1.msra.mxu0 %v410
        %612 = vmatprep.subr.mxu0 0.0
        %613 = vmatpush2.msra.mxu0 0.0
        %614 = vmatprep.subr.mxu0 0.0
        %615 = vmatpush2.msra.mxu0 0.0
        %616 = vmatprep.subr.mxu0 0.0
        %617 = vmatpush2.msra.mxu0 0.0
        %618 = vmatprep.subr.mxu0 0.0
        %619 = vmatpush2.msra.mxu0 0.0
        %620 = vmatprep.subr.mxu0 0.0
        %621 = vmatpush2.msra.mxu0 0.0
        %622 = vmatprep.subr.mxu0 0.0
        %623 = vmatpush2.msra.mxu0 0.0
        %624 = vmatprep.subr.mxu0 0.0
        %625 = vmatpush2.msra.mxu0 0.0
        %626 = vmatprep.subr.mxu0 0.0
        %627 = vmatpush2.msra.mxu0 0.0
        %628 = vmatprep.subr.mxu0 0.0
        %629 = vmatpush2.msra.mxu0 0.0
        %630 = vmatprep.subr.mxu0 0.0
        %631 = vmatpush2.msra.mxu0 0.0
        %632 = vmatprep.subr.mxu0 0.0
        %633 = vmatpush2.msra.mxu0 0.0
        %634 = vmatprep.subr.mxu0 0.0
        %635 = vmatpush2.msra.mxu0 0.0
        %636 = vmatprep.subr.mxu0 0.0
        %637 = vmatpush2.msra.mxu0 0.0
        %638 = vmatprep.subr.mxu0 0.0
        %639 = vmatpush2.msra.mxu0 0.0
        %640 = vmatprep.subr.mxu0 0.0
        %641 = vmatpush2.msra.mxu0 0.0
        %642 = vmatprep.subr.mxu0 0.0
        %643 = vmatpush2.msra.mxu0 0.0
        %644 = vmatprep.mubr.f32.mxu0 0.0
        %645 = vmatmul.mubr.f32.gmra.mxu0 %v409
        %v646 = vpop.f32.mrf.mxu0
        %v647 = vadd.f32 %v543, %v646
        %v648 = vpop.f32.mrf.mxu0
        %v649 = vadd.f32 %v547, %v648
        %650 = vdwg.mxu0
        %651 = vmatprep.subr.mxu0 %v533
        %652 = vmatpush1.msra.mxu0 %v532
        %653 = vmatprep.subr.mxu0 %v525
        %654 = vmatpush1.msra.mxu0 %v524
        %655 = vmatprep.subr.mxu0 %v517
        %656 = vmatpush1.msra.mxu0 %v516
        %657 = vmatprep.subr.mxu0 %v509
        %658 = vmatpush1.msra.mxu0 %v508
        %659 = vmatprep.subr.mxu0 %v501
        %660 = vmatpush1.msra.mxu0 %v500
        %661 = vmatprep.subr.mxu0 %v493
        %662 = vmatpush1.msra.mxu0 %v492
        %663 = vmatprep.subr.mxu0 %v485
        %664 = vmatpush1.msra.mxu0 %v484
        %665 = vmatprep.subr.mxu0 %v477
        %666 = vmatpush1.msra.mxu0 %v476
        %667 = vmatprep.subr.mxu0 %v469
        %668 = vmatpush1.msra.mxu0 %v468
        %669 = vmatprep.subr.mxu0 %v461
        %670 = vmatpush1.msra.mxu0 %v460
        %671 = vmatprep.subr.mxu0 %v453
        %672 = vmatpush1.msra.mxu0 %v452
        %673 = vmatprep.subr.mxu0 %v445
        %674 = vmatpush1.msra.mxu0 %v444
        %675 = vmatprep.subr.mxu0 %v437
        %676 = vmatpush1.msra.mxu0 %v436
        %677 = vmatprep.subr.mxu0 %v429
        %678 = vmatpush1.msra.mxu0 %v428
        %679 = vmatprep.subr.mxu0 %v421
        %680 = vmatpush1.msra.mxu0 %v420
        %681 = vmatprep.subr.mxu0 %v413
        %682 = vmatpush1.msra.mxu0 %v412
        %683 = vmatprep.subr.mxu0 0.0
        %684 = vmatpush2.msra.mxu0 0.0
        %685 = vmatprep.subr.mxu0 0.0
        %686 = vmatpush2.msra.mxu0 0.0
        %687 = vmatprep.subr.mxu0 0.0
        %688 = vmatpush2.msra.mxu0 0.0
        %689 = vmatprep.subr.mxu0 0.0
        %690 = vmatpush2.msra.mxu0 0.0
        %691 = vmatprep.subr.mxu0 0.0
        %692 = vmatpush2.msra.mxu0 0.0
        %693 = vmatprep.subr.mxu0 0.0
        %694 = vmatpush2.msra.mxu0 0.0
        %695 = vmatprep.subr.mxu0 0.0
        %696 = vmatpush2.msra.mxu0 0.0
        %697 = vmatprep.subr.mxu0 0.0
        %698 = vmatpush2.msra.mxu0 0.0
        %699 = vmatprep.subr.mxu0 0.0
        %700 = vmatpush2.msra.mxu0 0.0
        %701 = vmatprep.subr.mxu0 0.0
        %702 = vmatpush2.msra.mxu0 0.0
        %703 = vmatprep.subr.mxu0 0.0
        %704 = vmatpush2.msra.mxu0 0.0
        %705 = vmatprep.subr.mxu0 0.0
        %706 = vmatpush2.msra.mxu0 0.0
        %707 = vmatprep.subr.mxu0 0.0
        %708 = vmatpush2.msra.mxu0 0.0
        %709 = vmatprep.subr.mxu0 0.0
        %710 = vmatpush2.msra.mxu0 0.0
        %711 = vmatprep.subr.mxu0 0.0
        %712 = vmatpush2.msra.mxu0 0.0
        %713 = vmatprep.subr.mxu0 0.0
        %714 = vmatpush2.msra.mxu0 0.0
        %715 = vmatprep.mubr.f32.mxu0 0.0
        %716 = vmatmul.mubr.f32.gmra.mxu0 %v409
        %v717 = vpop.f32.mrf.mxu0
        %v718 = vadd.f32 %v551, %v717
        %v719 = vpop.f32.mrf.mxu0
        %v720 = vadd.f32 %v555, %v719
        %721 = vdwg.mxu0
        %722 = vmatprep.subr.mxu0 %v535
        %723 = vmatpush1.msra.mxu0 %v534
        %724 = vmatprep.subr.mxu0 %v527
        %725 = vmatpush1.msra.mxu0 %v526
        %726 = vmatprep.subr.mxu0 %v519
        %727 = vmatpush1.msra.mxu0 %v518
        %728 = vmatprep.subr.mxu0 %v511
        %729 = vmatpush1.msra.mxu0 %v510
        %730 = vmatprep.subr.mxu0 %v503
        %731 = vmatpush1.msra.mxu0 %v502
        %732 = vmatprep.subr.mxu0 %v495
        %733 = vmatpush1.msra.mxu0 %v494
        %734 = vmatprep.subr.mxu0 %v487
        %735 = vmatpush1.msra.mxu0 %v486
        %736 = vmatprep.subr.mxu0 %v479
        %737 = vmatpush1.msra.mxu0 %v478
        %738 = vmatprep.subr.mxu0 %v471
        %739 = vmatpush1.msra.mxu0 %v470
        %740 = vmatprep.subr.mxu0 %v463
        %741 = vmatpush1.msra.mxu0 %v462
        %742 = vmatprep.subr.mxu0 %v455
        %743 = vmatpush1.msra.mxu0 %v454
        %744 = vmatprep.subr.mxu0 %v447
        %745 = vmatpush1.msra.mxu0 %v446
        %746 = vmatprep.subr.mxu0 %v439
        %747 = vmatpush1.msra.mxu0 %v438
        %748 = vmatprep.subr.mxu0 %v431
        %749 = vmatpush1.msra.mxu0 %v430
        %750 = vmatprep.subr.mxu0 %v423
        %751 = vmatpush1.msra.mxu0 %v422
        %752 = vmatprep.subr.mxu0 %v415
        %753 = vmatpush1.msra.mxu0 %v414
        %754 = vmatprep.subr.mxu0 0.0
        %755 = vmatpush2.msra.mxu0 0.0
        %756 = vmatprep.subr.mxu0 0.0
        %757 = vmatpush2.msra.mxu0 0.0
        %758 = vmatprep.subr.mxu0 0.0
        %759 = vmatpush2.msra.mxu0 0.0
        %760 = vmatprep.subr.mxu0 0.0
        %761 = vmatpush2.msra.mxu0 0.0
        %762 = vmatprep.subr.mxu0 0.0
        %763 = vmatpush2.msra.mxu0 0.0
        %764 = vmatprep.subr.mxu0 0.0
        %765 = vmatpush2.msra.mxu0 0.0
        %766 = vmatprep.subr.mxu0 0.0
        %767 = vmatpush2.msra.mxu0 0.0
        %768 = vmatprep.subr.mxu0 0.0
        %769 = vmatpush2.msra.mxu0 0.0
        %770 = vmatprep.subr.mxu0 0.0
        %771 = vmatpush2.msra.mxu0 0.0
        %772 = vmatprep.subr.mxu0 0.0
        %773 = vmatpush2.msra.mxu0 0.0
        %774 = vmatprep.subr.mxu0 0.0
        %775 = vmatpush2.msra.mxu0 0.0
        %776 = vmatprep.subr.mxu0 0.0
        %777 = vmatpush2.msra.mxu0 0.0
        %778 = vmatprep.subr.mxu0 0.0
        %779 = vmatpush2.msra.mxu0 0.0
        %780 = vmatprep.subr.mxu0 0.0
        %781 = vmatpush2.msra.mxu0 0.0
        %782 = vmatprep.subr.mxu0 0.0
        %783 = vmatpush2.msra.mxu0 0.0
        %784 = vmatprep.subr.mxu0 0.0
        %785 = vmatpush2.msra.mxu0 0.0
        %786 = vmatprep.mubr.f32.mxu0 0.0
        %787 = vmatmul.mubr.f32.gmra.mxu0 %v409
        %v788 = vpop.f32.mrf.mxu0
        %v789 = vadd.f32 %v559, %v788
        %v790 = vpop.f32.mrf.mxu0
        %v791 = vadd.f32 %v563, %v790
        %792 = vdwg.mxu0
        %793 = vmatprep.subr.mxu0 %v537
        %794 = vmatpush1.msra.mxu0 %v536
        %795 = vmatprep.subr.mxu0 %v529
        %796 = vmatpush1.msra.mxu0 %v528
        %797 = vmatprep.subr.mxu0 %v521
        %798 = vmatpush1.msra.mxu0 %v520
        %799 = vmatprep.subr.mxu0 %v513
        %800 = vmatpush1.msra.mxu0 %v512
        %801 = vmatprep.subr.mxu0 %v505
        %802 = vmatpush1.msra.mxu0 %v504
        %803 = vmatprep.subr.mxu0 %v497
        %804 = vmatpush1.msra.mxu0 %v496
        %805 = vmatprep.subr.mxu0 %v489
        %806 = vmatpush1.msra.mxu0 %v488
        %807 = vmatprep.subr.mxu0 %v481
        %808 = vmatpush1.msra.mxu0 %v480
        %809 = vmatprep.subr.mxu0 %v473
        %810 = vmatpush1.msra.mxu0 %v472
        %811 = vmatprep.subr.mxu0 %v465
        %812 = vmatpush1.msra.mxu0 %v464
        %813 = vmatprep.subr.mxu0 %v457
        %814 = vmatpush1.msra.mxu0 %v456
        %815 = vmatprep.subr.mxu0 %v449
        %816 = vmatpush1.msra.mxu0 %v448
        %817 = vmatprep.subr.mxu0 %v441
        %818 = vmatpush1.msra.mxu0 %v440
        %819 = vmatprep.subr.mxu0 %v433
        %820 = vmatpush1.msra.mxu0 %v432
        %821 = vmatprep.subr.mxu0 %v425
        %822 = vmatpush1.msra.mxu0 %v424
        %823 = vmatprep.subr.mxu0 %v417
        %824 = vmatpush1.msra.mxu0 %v416
        %825 = vmatprep.subr.mxu0 0.0
        %826 = vmatpush2.msra.mxu0 0.0
        %827 = vmatprep.subr.mxu0 0.0
        %828 = vmatpush2.msra.mxu0 0.0
        %829 = vmatprep.subr.mxu0 0.0
        %830 = vmatpush2.msra.mxu0 0.0
        %831 = vmatprep.subr.mxu0 0.0
        %832 = vmatpush2.msra.mxu0 0.0
        %833 = vmatprep.subr.mxu0 0.0
        %834 = vmatpush2.msra.mxu0 0.0
        %835 = vmatprep.subr.mxu0 0.0
        %836 = vmatpush2.msra.mxu0 0.0
        %837 = vmatprep.subr.mxu0 0.0
        %838 = vmatpush2.msra.mxu0 0.0
        %839 = vmatprep.subr.mxu0 0.0
        %840 = vmatpush2.msra.mxu0 0.0
        %841 = vmatprep.subr.mxu0 0.0
        %842 = vmatpush2.msra.mxu0 0.0
        %843 = vmatprep.subr.mxu0 0.0
        %844 = vmatpush2.msra.mxu0 0.0
        %845 = vmatprep.subr.mxu0 0.0
        %846 = vmatpush2.msra.mxu0 0.0
        %847 = vmatprep.subr.mxu0 0.0
        %848 = vmatpush2.msra.mxu0 0.0
        %849 = vmatprep.subr.mxu0 0.0
        %850 = vmatpush2.msra.mxu0 0.0
        %851 = vmatprep.subr.mxu0 0.0
        %852 = vmatpush2.msra.mxu0 0.0
        %853 = vmatprep.subr.mxu0 0.0
        %854 = vmatpush2.msra.mxu0 0.0
        %855 = vmatprep.subr.mxu0 0.0
        %856 = vmatpush2.msra.mxu0 0.0
        %857 = vmatprep.mubr.f32.mxu0 0.0
        %858 = vmatmul.mubr.f32.gmra.mxu0 %v409
        %v859 = vpop.f32.mrf.mxu0
        %v860 = vadd.f32 %v567, %v859
        %v861 = vpop.f32.mrf.mxu0
        %v862 = vadd.f32 %v571, %v861
        %863 = vdwg.mxu0
        %v864 = vtanh.pop %v647
        %v865 = vtanh.pop %v649
        %v866 = vtanh.pop %v718
        %v867 = vtanh.pop %v720
        %v868 = vtanh.pop %v789
        %v869 = vtanh.pop %v791
        %v870 = vtanh.pop %v860
        %v871 = vtanh.pop %v862
        %v872 = vld [vmem:[%s272] sm:$0xff]
        %874 = vset.pattern.permute.xlu0 0
        %875 = vperm.xlu0 %874, %v872
        %v876 = vpop.permute.xlu0 %875
        %v878 = vmul.f32 %v864, %v876
        %879 = vset.pattern.permute.xlu0 1
        %880 = vperm.xlu0 %879, %v872
        %v881 = vpop.permute.xlu0 %880
        %v883 = vmul.f32 %v865, %v881
        %v884 = vadd.f32 %v878, %v883
        %885 = vset.pattern.permute.xlu0 2
        %886 = vperm.xlu0 %885, %v872
        %v887 = vpop.permute.xlu0 %886
        %v889 = vmul.f32 %v866, %v887
        %v890 = vadd.f32 %v884, %v889
        %891 = vset.pattern.permute.xlu0 3
        %892 = vperm.xlu0 %891, %v872
        %v893 = vpop.permute.xlu0 %892
        %v895 = vmul.f32 %v867, %v893
        %v896 = vadd.f32 %v890, %v895
        %897 = vset.pattern.permute.xlu0 4
        %898 = vperm.xlu0 %897, %v872
        %v899 = vpop.permute.xlu0 %898
        %v901 = vmul.f32 %v868, %v899
        %v902 = vadd.f32 %v896, %v901
        %903 = vset.pattern.permute.xlu0 5
        %904 = vperm.xlu0 %903, %v872
        %v905 = vpop.permute.xlu0 %904
        %v907 = vmul.f32 %v869, %v905
        %v908 = vadd.f32 %v902, %v907
        %909 = vset.pattern.permute.xlu0 6
        %910 = vperm.xlu0 %909, %v872
        %v911 = vpop.permute.xlu0 %910
        %v913 = vmul.f32 %v870, %v911
        %v914 = vadd.f32 %v908, %v913
        %915 = vset.pattern.permute.xlu0 7
        %916 = vperm.xlu0 %915, %v872
        %v917 = vpop.permute.xlu0 %916
        %v919 = vmul.f32 %v871, %v917
        %v920 = vadd.f32 %v914, %v919
        %921 = vst [vmem:[%s308] sm:$0xff] %v920
        %v922 = vadd.f32 %v315, %v920
        %923 = vst [vmem:[#allocation2] sm:$0xff] %v922
        %s924 = sand.u32 %s164, 1
        %s925 = scalar_lea.sflag [#allocation5], %s924
        %s926 = sand.u32 %s164, 1
        %s927 = smul.addr %s926, 8
        %s928 = scalar_lea.vmem [#allocation11], %s927
        // Predicated region
        $region65: #{tpu_custom_call.1} parent=43 // pred_check
          %p929 = pneg %p174
        $region66: #{tpu_custom_call.1} parent=43 // pred_check_branch
          %931 = sbr.rel (%p929) target = $region68
        $region67: #{tpu_custom_call.1} parent=43 // pred_region
          %s933 = ssub.s32 128, 128
          %934 = vsyncadd %s925, %s933
          %s935 = smul.addr %s25, 128
          %s936 = scalar_lea.hbm %s6, %s935
          %s938 = sshll.u32 %s928, 4
          %s939 = int_to_ptr.vmem [resolvable:$true] %s938
          %941 = dma.vmem_to_hbm [thread:$0]  %s939, 128, %s936, %s925
        $region68: #{tpu_custom_call.1} parent=43 // pred_fallthru
          _
      $region44: #{tpu_custom_call.1} parent=5 // pred_fallthru
        _
      %p942 = scmp.le.s32.totalorder 2, %s20
      // Predicated region
      $region69: #{tpu_custom_call.1} parent=5 // pred_check
        %p943 = pneg %p942
      $region70: #{tpu_custom_call.1} parent=5 // pred_check_branch
        %945 = sbr.rel (%p943) target = $region72
      $region71: #{tpu_custom_call.1} parent=5 // pred_region
        %s946 = ssub.s32 %s20, 2
        // Predicated region
        $region73: #{tpu_custom_call.1} parent=71 // pred_check
          %p947 = pneg %p180
        $region74: #{tpu_custom_call.1} parent=71 // pred_check_branch
          %949 = sbr.rel (%p947) target = $region76
        $region75: #{tpu_custom_call.1} parent=71 // pred_region
          %s950 = sand.u32 %s165, 1
          %s951 = scalar_lea.sflag [#allocation5], %s950
          %s952 = sand.u32 %s165, 1
          %s953 = smul.addr %s952, 8
          %s954 = scalar_lea.vmem [#allocation11], %s953
          %955 = dma.done %s951, 128
        $region76: #{tpu_custom_call.1} parent=71 // pred_fallthru
          _
      $region72: #{tpu_custom_call.1} parent=5 // pred_fallthru
        _
    $region6: #{tpu_custom_call.1} parent=1 // loop_footer
      %s24 = sadd.s32 1, %s20
    $region7: #{tpu_custom_call.1} parent=1 // loop_footer_branch
      %19 = sbr.rel target = $region3
    $region8: #{tpu_custom_call.1} parent=1 // loop_exit
      _
    %956 = vsyncpa [#allocation4], 1
    %s957 = scalar_lea.sflag [#allocation4], 1
    %958 = vsyncpa %s957, 1
    %959 = vsyncpa [#allocation7], 1
    %s960 = scalar_lea.sflag [#allocation7], 1
    %961 = vsyncpa %s960, 1
    %962 = vsyncpa [#allocation10], 1
    %963 = vsyncpa [#allocation5], 1
    %s964 = scalar_lea.sflag [#allocation5], 1
    %965 = vsyncpa %s964, 1

</llo_original>
